<compile_context>
chip_gen: v5e
topology: v5e:2x2
jax: 0.10.0
libtpu: 0.0.40
codegen_flags: <defaults>
</compile_context>

<pallas_src>
import jax
import jax.numpy as jnp
from jax.experimental import pallas as pl
from jax.experimental.pallas import tpu as pltpu


def _dual_weighted_update_kernel(sigma_ref, x_ref, xh_ref, y_ref, w_ref, o_ref):
    """One row-block: out = y + sigma * (w * forward_grad(x_tilde)).

    sigma_ref : (1,)    scalar in SMEM
    x_ref     : (tm, N) current row-block of x_tilde (channel squeezed)
    xh_ref    : (hr, N) halo: the row-tile starting at the next block's first
                        row (clamped at the bottom; fixed up there by pl.when)
    y_ref, w_ref, o_ref : (2, tm, N)
    """
    sigma = sigma_ref[0]
    x = x_ref[...]                                   # (tm, N)
    tm, n = x.shape

    # Horizontal forward difference: dx[:, j] = x[:, j+1] - x[:, j]; the last
    # column is duplicated so the difference is exactly zero at j = N-1.
    x_right = jnp.concatenate([x[:, 1:], x[:, n - 1:n]], axis=1)
    o_ref[0] = y_ref[0] + sigma * (w_ref[0] * (x_right - x))

    # Vertical forward difference: dy[r, :] = x[r+1, :] - x[r, :]; the row below
    # the block comes from the halo view.  Full-width lane-dense store.
    x_below = jnp.concatenate([x[1:, :], xh_ref[0:1, :]], axis=0)
    dy = x_below - x
    o_ref[1] = y_ref[1] + sigma * (w_ref[1] * dy)

    # Only the final block contains the image's last row, where dy must be 0
    # (the clamped halo row is garbage there).  Gated with pl.when so every
    # other block pays zero mask work.
    @pl.when(pl.program_id(0) == pl.num_programs(0) - 1)
    def _():
        row = jax.lax.broadcasted_iota(jnp.int32, (tm, n), 0)
        dy_fix = jnp.where(row == tm - 1, jnp.zeros_like(dy), dy)
        o_ref[1] = y_ref[1] + sigma * (w_ref[1] * dy_fix)


def dual_weighted_update(x_tilde, y, w, sigma, *, tm=None):
    """Pallas TPU forward of DualWeightedUpdate.

    x_tilde: [1, M, N]; y, w: [2, M, N]; sigma: [1] (scalar step size).
    Returns [2, M, N].  y is aliased to the output (donate it under jit to
    update the dual variable in place).
    """
    C, M, N = x_tilde.shape
    assert C == 1
    assert y.shape == (2, M, N) and w.shape == (2, M, N)
    assert sigma.shape == (1,)

    itemsize = x_tilde.dtype.itemsize
    sub = 16 if itemsize == 2 else 8          # min sublane rows (bf16 packs 16)
    assert M % sub == 0 and N % 128 == 0, "demo assumes tile-aligned spatial dims"

    if tm is None:
        # ~2 MiB of x_tilde rows per block -> ~14 MiB streamed per step, so the
        # ~0.35 us per-step overhead is <10% even on v7x's 3.2 TB/s HBM.
        tm = max(sub, (2 << 20) // (N * itemsize))
        # Guarantee >=2 blocks so v7x's two TensorCores both stream; prefer >=4
        # blocks when each block still moves >= ~1 MiB of x_tilde.
        if M // 2 >= sub:
            tm = min(tm, M // 2)
        if M // 4 >= sub and (M // 4) * N * itemsize >= (1 << 20):
            tm = min(tm, M // 4)
        tm = min(tm, M)
        tm -= tm % sub
        while M % tm:
            tm -= sub
    assert tm >= sub and tm % sub == 0 and M % tm == 0
    nblk = M // tm
    hstride = tm // sub                  # halo block-index stride (units of sub rows)
    last_halo = M // sub - 1

    # Generation-aware VMEM budget: 2x the per-step block working set (double
    # buffering) + headroom for the in-kernel shifted-copy temporaries, capped
    # 16 MiB below the physical VMEM of this chip (64 MiB v7x, 128 MiB v5e/v6e).
    try:
        vmem_cap = int(getattr(pltpu.get_tpu_info(), "vmem_capacity_bytes", 64 << 20))
    except Exception:  # no TPU info available -> assume the smallest (v7x)
        vmem_cap = 64 << 20
    step_bytes = (7 * tm + sub) * N * itemsize      # x + halo + y + w + out blocks
    temp_bytes = 3 * tm * N * 4                     # concat-shift temporaries (f32)
    vmem_bytes = int(max(min(2 * step_bytes + temp_bytes + (4 << 20),
                             vmem_cap - (16 << 20)),
                         8 << 20))

    x_spec = pl.BlockSpec((pl.Squeezed(), tm, N), lambda i: (0, i, 0))
    halo_spec = pl.BlockSpec(
        (pl.Squeezed(), sub, N),
        lambda i: (0, jnp.minimum((i + 1) * hstride, last_halo), 0))
    chan_spec = pl.BlockSpec((2, tm, N), lambda i: (0, i, 0))

    return pl.pallas_call(
        _dual_weighted_update_kernel,
        out_shape=jax.ShapeDtypeStruct((2, M, N), y.dtype),
        grid=(nblk,),
        in_specs=[
            pl.BlockSpec(memory_space=pltpu.MemorySpace.SMEM),  # sigma (scalar)
            x_spec,      # x_tilde, current row-block
            halo_spec,   # x_tilde, sub-row halo tile below the block
            chan_spec,   # y
            chan_spec,   # w
        ],
        out_specs=chan_spec,
        input_output_aliases={3: 0},     # out aliases y (in-place dual update)
        compiler_params=pltpu.CompilerParams(
            dimension_semantics=("parallel",),
            vmem_limit_bytes=vmem_bytes,
        ),
    )(sigma, x_tilde, x_tilde, y, w)


if __name__ == "__main__":
    M, N = 16, 256   # small, tile-aligned spatial size

    key = jax.random.PRNGKey(0)
    k1, k2, k3 = jax.random.split(key, 3)
    x_tilde = jax.random.normal(k1, (1, M, N), dtype=jnp.float32)
    y = jax.random.normal(k2, (2, M, N), dtype=jnp.float32)
    w = jax.random.uniform(k3, (2, M, N), dtype=jnp.float32)
    sigma = jnp.array([0.05], dtype=jnp.float32)

    # Pure-JAX reference (ForwardWeightedGradient + dual update), computed
    # BEFORE the kernel call because y is donated/aliased into the output.
    x = x_tilde[0]
    dx_ref = jnp.zeros_like(x).at[:, :-1].set(x[:, 1:] - x[:, :-1])
    dy_ref = jnp.zeros_like(x).at[:-1, :].set(x[1:, :] - x[:-1, :])
    ref = y + sigma[0] * (w * jnp.stack([dx_ref, dy_ref], axis=0))
    ref = jax.block_until_ready(ref)

    # Auto tm -> 8 here (2 blocks), exercising the cross-block halo path, the
    # last-block pl.when fix, and the parallel grid split; y is donated so the
    # pallas aliasing updates it in place.
    run = jax.jit(dual_weighted_update, donate_argnums=(1,))
    out = jax.block_until_ready(run(x_tilde, y, w, sigma))

    assert out.shape == (2, M, N)
    assert jnp.allclose(out, ref, atol=1e-5, rtol=1e-5), "mismatch vs reference"
    print("KERNEL_OK")
</pallas_src>

<mosaic_0001>
module attributes {stable_mosaic.version = 11 : i64} {
  func.func @_dual_weighted_update_kernel(%arg0: i32, %arg1: memref<1xf32, #tpu.memory_space<smem>>, %arg2: memref<1x8x256xf32, #tpu.memory_space<vmem>>, %arg3: memref<1x8x256xf32, #tpu.memory_space<vmem>>, %arg4: memref<2x8x256xf32, #tpu.memory_space<vmem>>, %arg5: memref<2x8x256xf32, #tpu.memory_space<vmem>>, %arg6: memref<2x8x256xf32, #tpu.memory_space<vmem>>) attributes {dimension_semantics = [#tpu.dimension_semantics<parallel>], iteration_bounds = array<i64: 2>, scalar_prefetch = 0 : i64, scratch_operands = 0 : i64, tpu.core_type = #tpu.core_type<tc>, window_params = [{transform_indices = @transform_0, window_bounds = array<i64: 1>}, {transform_indices = @transform_1, window_bounds = array<i64: 1, 8, 256>}, {transform_indices = @transform_2, window_bounds = array<i64: 1, 8, 256>}, {transform_indices = @transform_3, window_bounds = array<i64: 2, 8, 256>}, {transform_indices = @transform_4, window_bounds = array<i64: 2, 8, 256>}, {transform_indices = @transform_5, window_bounds = array<i64: 2, 8, 256>}]} {
    %c0 = arith.constant 0 : index
    %0 = memref.load %arg1[%c0] : memref<1xf32, #tpu.memory_space<smem>>
    %c0_0 = arith.constant 0 : index
    %c0_1 = arith.constant 0 : index
    %c0_2 = arith.constant 0 : index
    %1 = vector.load %arg2[%c0_0, %c0_1, %c0_2] : memref<1x8x256xf32, #tpu.memory_space<vmem>>, vector<1x8x256xf32>
    %2 = vector.shape_cast %1 : vector<1x8x256xf32> to vector<8x256xf32>
    %3 = vector.extract_strided_slice %2 {offsets = [0, 1], sizes = [8, 255], strides = [1, 1]} : vector<8x256xf32> to vector<8x255xf32>
    %4 = vector.extract_strided_slice %2 {offsets = [0, 255], sizes = [8, 1], strides = [1, 1]} : vector<8x256xf32> to vector<8x1xf32>
    %5 = tpu.concatenate %3, %4 in 1 : vector<8x255xf32>, vector<8x1xf32> -> vector<8x256xf32>
    %c0_3 = arith.constant 0 : index
    %c0_4 = arith.constant 0 : index
    %c0_5 = arith.constant 0 : index
    %6 = vector.load %arg4[%c0_3, %c0_4, %c0_5] : memref<2x8x256xf32, #tpu.memory_space<vmem>>, vector<1x8x256xf32>
    %7 = vector.shape_cast %6 : vector<1x8x256xf32> to vector<8x256xf32>
    %c0_6 = arith.constant 0 : index
    %c0_7 = arith.constant 0 : index
    %c0_8 = arith.constant 0 : index
    %8 = vector.load %arg5[%c0_6, %c0_7, %c0_8] : memref<2x8x256xf32, #tpu.memory_space<vmem>>, vector<1x8x256xf32>
    %9 = vector.shape_cast %8 : vector<1x8x256xf32> to vector<8x256xf32>
    %10 = arith.subf %5, %2 : vector<8x256xf32>
    %11 = arith.mulf %9, %10 : vector<8x256xf32>
    %12 = vector.broadcast %0 : f32 to vector<8x256xf32>
    %13 = arith.mulf %12, %11 : vector<8x256xf32>
    %14 = arith.addf %7, %13 : vector<8x256xf32>
    %c0_9 = arith.constant 0 : index
    %c0_10 = arith.constant 0 : index
    %c0_11 = arith.constant 0 : index
    %15 = vector.load %arg6[%c0_9, %c0_10, %c0_11] : memref<2x8x256xf32, #tpu.memory_space<vmem>>, vector<1x8x256xf32>
    %16 = vector.shape_cast %15 : vector<1x8x256xf32> to vector<8x256xf32>
    %17 = vector.shape_cast %14 : vector<8x256xf32> to vector<1x8x256xf32>
    tpu.vector_store %arg6[%c0_9, %c0_10, %c0_11], %17 {strides = array<i32>} : memref<2x8x256xf32, #tpu.memory_space<vmem>>, vector<1x8x256xf32>,
    %18 = vector.extract_strided_slice %2 {offsets = [1, 0], sizes = [7, 256], strides = [1, 1]} : vector<8x256xf32> to vector<7x256xf32>
    %c0_12 = arith.constant 0 : index
    %c0_13 = arith.constant 0 : index
    %c0_14 = arith.constant 0 : index
    %19 = vector.load %arg3[%c0_12, %c0_13, %c0_14] : memref<1x8x256xf32, #tpu.memory_space<vmem>>, vector<1x1x256xf32>
    %20 = vector.shape_cast %19 : vector<1x1x256xf32> to vector<1x256xf32>
    %21 = tpu.concatenate %18, %20 in 0 : vector<7x256xf32>, vector<1x256xf32> -> vector<8x256xf32>
    %22 = arith.subf %21, %2 : vector<8x256xf32>
    %c1 = arith.constant 1 : index
    %c0_15 = arith.constant 0 : index
    %c0_16 = arith.constant 0 : index
    %23 = vector.load %arg4[%c1, %c0_15, %c0_16] : memref<2x8x256xf32, #tpu.memory_space<vmem>>, vector<1x8x256xf32>
    %24 = vector.shape_cast %23 : vector<1x8x256xf32> to vector<8x256xf32>
    %c1_17 = arith.constant 1 : index
    %c0_18 = arith.constant 0 : index
    %c0_19 = arith.constant 0 : index
    %25 = vector.load %arg5[%c1_17, %c0_18, %c0_19] : memref<2x8x256xf32, #tpu.memory_space<vmem>>, vector<1x8x256xf32>
    %26 = vector.shape_cast %25 : vector<1x8x256xf32> to vector<8x256xf32>
    %27 = arith.mulf %26, %22 : vector<8x256xf32>
    %28 = vector.broadcast %0 : f32 to vector<8x256xf32>
    %29 = arith.mulf %28, %27 : vector<8x256xf32>
    %30 = arith.addf %24, %29 : vector<8x256xf32>
    %c1_20 = arith.constant 1 : index
    %c0_21 = arith.constant 0 : index
    %c0_22 = arith.constant 0 : index
    %31 = vector.load %arg6[%c1_20, %c0_21, %c0_22] : memref<2x8x256xf32, #tpu.memory_space<vmem>>, vector<1x8x256xf32>
    %32 = vector.shape_cast %31 : vector<1x8x256xf32> to vector<8x256xf32>
    %33 = vector.shape_cast %30 : vector<8x256xf32> to vector<1x8x256xf32>
    tpu.vector_store %arg6[%c1_20, %c0_21, %c0_22], %33 {strides = array<i32>} : memref<2x8x256xf32, #tpu.memory_space<vmem>>, vector<1x8x256xf32>,
    %c1_i32 = arith.constant 1 : i32
    %34 = arith.cmpi eq, %arg0, %c1_i32 : i32
    %35 = arith.extui %34 : i1 to i32
    %c0_i32 = arith.constant 0 : i32
    %36 = arith.cmpi ne, %35, %c0_i32 : i32
    scf.if %36 {
      %37 = tpu.iota {dimensions = array<i32: 0>} : vector<8x256xi32>
      %c7_i32 = arith.constant 7 : i32
      %38 = vector.broadcast %c7_i32 : i32 to vector<8x256xi32>
      %39 = arith.cmpi eq, %37, %38 : vector<8x256xi32>
      %cst = arith.constant 0.000000e+00 : f32
      %40 = vector.broadcast %cst : f32 to vector<8x256xf32>
      %41 = arith.select %39, %40, %22 : vector<8x256xi1>, vector<8x256xf32>
      %c1_23 = arith.constant 1 : index
      %c0_24 = arith.constant 0 : index
      %c0_25 = arith.constant 0 : index
      %42 = vector.load %arg4[%c1_23, %c0_24, %c0_25] : memref<2x8x256xf32, #tpu.memory_space<vmem>>, vector<1x8x256xf32>
      %43 = vector.shape_cast %42 : vector<1x8x256xf32> to vector<8x256xf32>
      %c1_26 = arith.constant 1 : index
      %c0_27 = arith.constant 0 : index
      %c0_28 = arith.constant 0 : index
      %44 = vector.load %arg5[%c1_26, %c0_27, %c0_28] : memref<2x8x256xf32, #tpu.memory_space<vmem>>, vector<1x8x256xf32>
      %45 = vector.shape_cast %44 : vector<1x8x256xf32> to vector<8x256xf32>
      %46 = arith.mulf %45, %41 : vector<8x256xf32>
      %47 = vector.broadcast %0 : f32 to vector<8x256xf32>
      %48 = arith.mulf %47, %46 : vector<8x256xf32>
      %49 = arith.addf %43, %48 : vector<8x256xf32>
      %c1_29 = arith.constant 1 : index
      %c0_30 = arith.constant 0 : index
      %c0_31 = arith.constant 0 : index
      %50 = vector.load %arg6[%c1_29, %c0_30, %c0_31] : memref<2x8x256xf32, #tpu.memory_space<vmem>>, vector<1x8x256xf32>
      %51 = vector.shape_cast %50 : vector<1x8x256xf32> to vector<8x256xf32>
      %52 = vector.shape_cast %49 : vector<8x256xf32> to vector<1x8x256xf32>
      tpu.vector_store %arg6[%c1_29, %c0_30, %c0_31], %52 {strides = array<i32>} : memref<2x8x256xf32, #tpu.memory_space<vmem>>, vector<1x8x256xf32>,
    } else {
    }
    return
  }
  func.func @transform_0(%arg0: i32) -> i32 {
    %c0_i32 = arith.constant 0 : i32
    %c0_i32_0 = arith.constant 0 : i32
    return %c0_i32 : i32
  }
  func.func @transform_1(%arg0: i32) -> (i32, i32, i32) {
    %c0_i32 = arith.constant 0 : i32
    %c0_i32_0 = arith.constant 0 : i32
    %c0_i32_1 = arith.constant 0 : i32
    return %c0_i32, %arg0, %c0_i32_0 : i32, i32, i32
  }
  func.func @transform_2(%arg0: i32) -> (i32, i32, i32) {
    %c1_i32 = arith.constant 1 : i32
    %0 = arith.addi %arg0, %c1_i32 : i32
    %c1_i32_0 = arith.constant 1 : i32
    %1 = arith.muli %0, %c1_i32_0 : i32
    %c1_i32_1 = arith.constant 1 : i32
    %2 = arith.minsi %1, %c1_i32_1 : i32
    %c0_i32 = arith.constant 0 : i32
    %c0_i32_2 = arith.constant 0 : i32
    %c0_i32_3 = arith.constant 0 : i32
    return %c0_i32, %2, %c0_i32_2 : i32, i32, i32
  }
  func.func @transform_3(%arg0: i32) -> (i32, i32, i32) {
    %c0_i32 = arith.constant 0 : i32
    %c0_i32_0 = arith.constant 0 : i32
    %c0_i32_1 = arith.constant 0 : i32
    return %c0_i32, %arg0, %c0_i32_0 : i32, i32, i32
  }
  func.func @transform_4(%arg0: i32) -> (i32, i32, i32) {
    %c0_i32 = arith.constant 0 : i32
    %c0_i32_0 = arith.constant 0 : i32
    %c0_i32_1 = arith.constant 0 : i32
    return %c0_i32, %arg0, %c0_i32_0 : i32, i32, i32
  }
  func.func @transform_5(%arg0: i32) -> (i32, i32, i32) {
    %c0_i32 = arith.constant 0 : i32
    %c0_i32_0 = arith.constant 0 : i32
    %c0_i32_1 = arith.constant 0 : i32
    return %c0_i32, %arg0, %c0_i32_0 : i32, i32, i32
  }
}

</mosaic_0001>

<llo_original>
// kernel: dual_weighted_update.1
$region0: #{dual_weighted_update.1}
  #allocation0 [shape = 'u32[]', space=smem, size = 0x4, offset = 0x4, fixed_abs, tag = 'smem constant byte address 0x4 - core index']
  #allocation1 [shape = 'u32[72,128]{1,0:T(1,128)}', space=vmem, size = 0x9000, scoped, tag = 'internal scratch']
  #allocation2 [shape = 'f32[1]{0:T(128)S(6)}', space=smem, size = 0x200, scoped, tag = 'scoped memory for dual_weighted_update.1']
  %s0 = inlined_call_operand.<no memory space> [shape: f32[1], index: 0, kind: input, shape index: {}]
  %s1 = inlined_call_operand.hbm [shape: f32[1,16,256], index: 1, kind: input, shape index: {}, may-alias: {1,2}]
  %s2 = inlined_call_operand.hbm [shape: f32[1,16,256], index: 2, kind: input, shape index: {}, may-alias: {1,2}]
  %s3 = inlined_call_operand.hbm [shape: f32[2,16,256], index: 3, kind: input, shape index: {}, may-alias: {3,5}]
  %s4 = inlined_call_operand.hbm [shape: f32[2,16,256], index: 4, kind: input, shape index: {}]
  %s5 = inlined_call_operand.hbm [shape: f32[2,16,256], index: 5, kind: output, shape index: {}, may-alias: {3,5}]
  %s6 = sld [smem:[#allocation0]]
  $region73: #{dual_weighted_update.1} parent=0
    _
  %s8 = ssub.s32 1, %s6
  %s9 = scalar_select 0, %s8, %s6
  %10 = sst [smem:[#allocation2]] %s0
  $region1: #{dual_weighted_update.1} parent=0
    #allocation3 [shape = 'u8[16384]{0}', space=vmem, size = 0x4000, scoped, tag = 'input window, operand 1']
    #allocation4 [shape = 's32[2]{0}', space=sflag, size = 0x8, scoped, tag = 'scoped memory for dual_weighted_update.1']
    #allocation5 [shape = 's32[2]{0}', space=sflag, size = 0x8, scoped, tag = 'scoped memory for dual_weighted_update.1']
    #allocation6 [shape = 'u8[16384]{0}', space=vmem, size = 0x4000, scoped, tag = 'input window, operand 2']
    #allocation7 [shape = 's32[2]{0}', space=sflag, size = 0x8, scoped, tag = 'scoped memory for dual_weighted_update.1']
    #allocation8 [shape = 'u8[32768]{0}', space=vmem, size = 0x8000, scoped, tag = 'input window, operand 3']
    #allocation9 [shape = 'u8[32768]{0}', space=vmem, size = 0x8000, scoped, tag = 'input window, operand 4']
    #allocation10 [shape = 's32[2]{0}', space=sflag, size = 0x8, scoped, tag = 'scoped memory for dual_weighted_update.1']
    #allocation11 [shape = 'u8[32768]{0}', space=vmem, size = 0x8000, scoped, tag = 'output window, operand 0']
    %11 = vsyncpa [#allocation4], 0
    %s12 = scalar_lea.sflag [#allocation4], 1
    %13 = vsyncpa %s12, 0
    %14 = vsyncpa [#allocation7], 0
    %s15 = scalar_lea.sflag [#allocation7], 1
    %16 = vsyncpa %s15, 0
    %17 = vsyncpa [#allocation10], 0
    %s18 = scalar_lea.sflag [#allocation10], 1
    %19 = vsyncpa %s18, 0
    %20 = vsyncpa [#allocation5], 0
    %s21 = scalar_lea.sflag [#allocation5], 1
    %22 = vsyncpa %s21, 0
    loop: start=0, step=1, limit=4
    $region2: #{dual_weighted_update.1} parent=1 // loop_pre_header
      _
    $region3: #{dual_weighted_update.1} parent=1 // loop_header
      %s24 = sphi 0, %s28
      %p25 = scmp.ge.s32.totalorder %s24, 4
      %s32 = sphi 0, %s32
      %s34 = sphi 0, %s32
      %s35 = sphi 0, %s34
      %s49 = sphi 0, %s35
      %s55 = sphi 0, %s57
      %s58 = sphi 0, %s55
      %s59 = sphi 0, %s58
      %s75 = sphi 0, %s59
      %s87 = sphi 0, %s89
      %s90 = sphi 0, %s87
      %s91 = sphi 0, %s90
      %s107 = sphi 0, %s91
      %s113 = sphi 0, %s115
      %s116 = sphi 0, %s113
      %s117 = sphi 0, %s116
      %s133 = sphi 0, %s117
      %s139 = sphi 0, %s141
      %s142 = sphi 0, %s139
      %s143 = sphi 0, %s142
      %s159 = sphi 0, %s143
      %s165 = sphi 0, %s167
      %s168 = sphi 0, %s165
      %s169 = sphi 0, %s168
      %s185 = sphi 0, %s169
    $region4: #{dual_weighted_update.1} parent=1 // loop_header_branch
      %27 = sbr.rel (%p25) target = $region8
    $region5: #{dual_weighted_update.1} parent=1 // loop_body
      %s29 = ssub.s32 %s24, 1
      %s30 = ssub.s32 %s24, 2
      %s31 = sadd.s32 %s24, 1
      %s33 = sadd.s32 %s32, 1
      %p36 = scmp.eq.s32.totalorder %s24, 1
      %p37 = scmp.ne.s32.totalorder %s32, %s34
      %p38 = scmp.eq.s32.totalorder %s24, 0
      %p39 = por %p37, %p38
      %p40 = scmp.ne.s32.totalorder %s32, %s34
      %p41 = scmp.eq.s32.totalorder %s29, 1
      %p42 = por %p40, %p41
      %p43 = scmp.ne.s32.totalorder %s34, %s35
      %p44 = scmp.eq.s32.totalorder %s29, 0
      %p45 = por %p43, %p44
      %p46 = scmp.ne.s32.totalorder %s34, %s35
      %p47 = scmp.eq.s32.totalorder %s30, 1
      %p48 = por %p46, %p47
      %p50 = scmp.ne.s32.totalorder %s35, %s49
      %p51 = scmp.eq.s32.totalorder %s30, 0
      %p52 = por %p50, %p51
      %s53 = ssub.s32 %s24, %s31
      %p54 = scmp.eq.s32.totalorder %s53, 0
      %s56 = sadd.s32 %s55, 1
      %s57 = scalar_select %p54, %s55, %s56
      %p60 = pneg %p54
      %p61 = scmp.eq.s32.totalorder %s24, 1
      %p62 = por %p60, %p61
      %p63 = scmp.ne.s32.totalorder %s55, %s58
      %p64 = scmp.eq.s32.totalorder %s24, 0
      %p65 = por %p63, %p64
      %p66 = scmp.ne.s32.totalorder %s55, %s58
      %p67 = scmp.eq.s32.totalorder %s29, 1
      %p68 = por %p66, %p67
      %p69 = scmp.ne.s32.totalorder %s58, %s59
      %p70 = scmp.eq.s32.totalorder %s29, 0
      %p71 = por %p69, %p70
      %p72 = scmp.ne.s32.totalorder %s58, %s59
      %p73 = scmp.eq.s32.totalorder %s30, 1
      %p74 = por %p72, %p73
      %p76 = scmp.ne.s32.totalorder %s59, %s75
      %p77 = scmp.eq.s32.totalorder %s30, 0
      %p78 = por %p76, %p77
      %s79 = sadd.s32 %s24, 1
      %p80 = scmp.lt.s32.totalorder %s79, 1
      %s81 = scalar_select %p80, %s79, 1
      %s82 = sadd.s32 %s31, 1
      %p83 = scmp.lt.s32.totalorder %s82, 1
      %s84 = scalar_select %p83, %s82, 1
      %s85 = ssub.s32 %s81, %s84
      %p86 = scmp.eq.s32.totalorder %s85, 0
      %s88 = sadd.s32 %s87, 1
      %s89 = scalar_select %p86, %s87, %s88
      %p92 = pneg %p86
      %p93 = scmp.eq.s32.totalorder %s24, 1
      %p94 = por %p92, %p93
      %p95 = scmp.ne.s32.totalorder %s87, %s90
      %p96 = scmp.eq.s32.totalorder %s24, 0
      %p97 = por %p95, %p96
      %p98 = scmp.ne.s32.totalorder %s87, %s90
      %p99 = scmp.eq.s32.totalorder %s29, 1
      %p100 = por %p98, %p99
      %p101 = scmp.ne.s32.totalorder %s90, %s91
      %p102 = scmp.eq.s32.totalorder %s29, 0
      %p103 = por %p101, %p102
      %p104 = scmp.ne.s32.totalorder %s90, %s91
      %p105 = scmp.eq.s32.totalorder %s30, 1
      %p106 = por %p104, %p105
      %p108 = scmp.ne.s32.totalorder %s91, %s107
      %p109 = scmp.eq.s32.totalorder %s30, 0
      %p110 = por %p108, %p109
      %s111 = ssub.s32 %s24, %s31
      %p112 = scmp.eq.s32.totalorder %s111, 0
      %s114 = sadd.s32 %s113, 1
      %s115 = scalar_select %p112, %s113, %s114
      %p118 = pneg %p112
      %p119 = scmp.eq.s32.totalorder %s24, 1
      %p120 = por %p118, %p119
      %p121 = scmp.ne.s32.totalorder %s113, %s116
      %p122 = scmp.eq.s32.totalorder %s24, 0
      %p123 = por %p121, %p122
      %p124 = scmp.ne.s32.totalorder %s113, %s116
      %p125 = scmp.eq.s32.totalorder %s29, 1
      %p126 = por %p124, %p125
      %p127 = scmp.ne.s32.totalorder %s116, %s117
      %p128 = scmp.eq.s32.totalorder %s29, 0
      %p129 = por %p127, %p128
      %p130 = scmp.ne.s32.totalorder %s116, %s117
      %p131 = scmp.eq.s32.totalorder %s30, 1
      %p132 = por %p130, %p131
      %p134 = scmp.ne.s32.totalorder %s117, %s133
      %p135 = scmp.eq.s32.totalorder %s30, 0
      %p136 = por %p134, %p135
      %s137 = ssub.s32 %s24, %s31
      %p138 = scmp.eq.s32.totalorder %s137, 0
      %s140 = sadd.s32 %s139, 1
      %s141 = scalar_select %p138, %s139, %s140
      %p144 = pneg %p138
      %p145 = scmp.eq.s32.totalorder %s24, 1
      %p146 = por %p144, %p145
      %p147 = scmp.ne.s32.totalorder %s139, %s142
      %p148 = scmp.eq.s32.totalorder %s24, 0
      %p149 = por %p147, %p148
      %p150 = scmp.ne.s32.totalorder %s139, %s142
      %p151 = scmp.eq.s32.totalorder %s29, 1
      %p152 = por %p150, %p151
      %p153 = scmp.ne.s32.totalorder %s142, %s143
      %p154 = scmp.eq.s32.totalorder %s29, 0
      %p155 = por %p153, %p154
      %p156 = scmp.ne.s32.totalorder %s142, %s143
      %p157 = scmp.eq.s32.totalorder %s30, 1
      %p158 = por %p156, %p157
      %p160 = scmp.ne.s32.totalorder %s143, %s159
      %p161 = scmp.eq.s32.totalorder %s30, 0
      %p162 = por %p160, %p161
      %s163 = ssub.s32 %s24, %s31
      %p164 = scmp.eq.s32.totalorder %s163, 0
      %s166 = sadd.s32 %s165, 1
      %s167 = scalar_select %p164, %s165, %s166
      %p170 = pneg %p164
      %p171 = scmp.eq.s32.totalorder %s24, 1
      %p172 = por %p170, %p171
      %p173 = scmp.ne.s32.totalorder %s165, %s168
      %p174 = scmp.eq.s32.totalorder %s24, 0
      %p175 = por %p173, %p174
      %p176 = scmp.ne.s32.totalorder %s165, %s168
      %p177 = scmp.eq.s32.totalorder %s29, 1
      %p178 = por %p176, %p177
      %p179 = scmp.ne.s32.totalorder %s168, %s169
      %p180 = scmp.eq.s32.totalorder %s29, 0
      %p181 = por %p179, %p180
      %p182 = scmp.ne.s32.totalorder %s168, %s169
      %p183 = scmp.eq.s32.totalorder %s30, 1
      %p184 = por %p182, %p183
      %p186 = scmp.ne.s32.totalorder %s169, %s185
      %p187 = scmp.eq.s32.totalorder %s30, 0
      %p188 = por %p186, %p187
      %p189 = scmp.le.s32.totalorder 1, %s24
      %p190 = scmp.lt.s32.totalorder %s24, 3
      %p191 = pnand %p189, %p190
      %p192 = pneg %p191
      // Predicated region
      $region9: #{dual_weighted_update.1} parent=5 // pred_check
        _
      $region10: #{dual_weighted_update.1} parent=5 // pred_check_branch
        %194 = sbr.rel (%p191) target = $region12
      $region11: #{dual_weighted_update.1} parent=5 // pred_region
        %s195 = ssub.s32 %s24, 1
        // Predicated region
        $region13: #{dual_weighted_update.1} parent=11 // pred_check
          %p196 = pneg %p45
        $region14: #{dual_weighted_update.1} parent=11 // pred_check_branch
          %198 = sbr.rel (%p196) target = $region16
        $region15: #{dual_weighted_update.1} parent=11 // pred_region
          _
        $region16: #{dual_weighted_update.1} parent=11 // pred_fallthru
          _
      $region12: #{dual_weighted_update.1} parent=5 // pred_fallthru
        _
      %p199 = scmp.lt.s32.totalorder %s24, 2
      // Predicated region
      $region17: #{dual_weighted_update.1} parent=5 // pred_check
        %p200 = pneg %p199
      $region18: #{dual_weighted_update.1} parent=5 // pred_check_branch
        %202 = sbr.rel (%p200) target = $region20
      $region19: #{dual_weighted_update.1} parent=5 // pred_region
        // Predicated region
        $region21: #{dual_weighted_update.1} parent=19 // pred_check
          %p203 = pneg %p65
        $region22: #{dual_weighted_update.1} parent=19 // pred_check_branch
          %205 = sbr.rel (%p203) target = $region24
        $region23: #{dual_weighted_update.1} parent=19 // pred_region
          %s206 = sand.u32 %s55, 1
          %s207 = scalar_lea.sflag [#allocation4], %s206
          %s208 = sand.u32 %s55, 1
          %s209 = smul.addr %s208, 16
          %s210 = scalar_lea.vmem [#allocation3], %s209
          %212 = vsyncadd %s207, 0
          %s213 = smul.addr %s24, 2
          %s214 = smul.addr %s213, 8
          %s215 = scalar_lea.hbm %s1, %s214
          %s217 = sshll.u32 %s215, 4
          %s218 = int_to_ptr.hbm [resolvable:$true] %s217
          %s219 = sshll.u32 %s210, 4
          %s220 = int_to_ptr.vmem [resolvable:$true] %s219
          %222 = dma.hbm_to_vmem [thread:$0]  %s218, 256, %s220, %s207
        $region24: #{dual_weighted_update.1} parent=19 // pred_fallthru
          _
        // Predicated region
        $region25: #{dual_weighted_update.1} parent=19 // pred_check
          %p223 = pneg %p97
        $region26: #{dual_weighted_update.1} parent=19 // pred_check_branch
          %225 = sbr.rel (%p223) target = $region28
        $region27: #{dual_weighted_update.1} parent=19 // pred_region
          %s226 = sand.u32 %s24, 1
          %s227 = scalar_lea.sflag [#allocation7], %s226
          %s228 = sand.u32 %s87, 1
          %s229 = smul.addr %s228, 16
          %s230 = scalar_lea.vmem [#allocation6], %s229
          %s231 = sadd.s32 %s24, 1
          %p232 = scmp.lt.s32.totalorder %s231, 1
          %s233 = scalar_select %p232, %s231, 1
          %235 = vsyncadd %s227, 0
          %s236 = smul.addr %s233, 2
          %s237 = smul.addr %s236, 8
          %s238 = scalar_lea.hbm %s2, %s237
          %s240 = sshll.u32 %s238, 4
          %s241 = int_to_ptr.hbm [resolvable:$true] %s240
          %s242 = sshll.u32 %s230, 4
          %s243 = int_to_ptr.vmem [resolvable:$true] %s242
          %245 = dma.hbm_to_vmem [thread:$0]  %s241, 256, %s243, %s227
        $region28: #{dual_weighted_update.1} parent=19 // pred_fallthru
          _
        // Predicated region
        $region29: #{dual_weighted_update.1} parent=19 // pred_check
          %p246 = pneg %p123
        $region30: #{dual_weighted_update.1} parent=19 // pred_check_branch
          %248 = sbr.rel (%p246) target = $region32
        $region31: #{dual_weighted_update.1} parent=19 // pred_region
          %s249 = sand.u32 %s24, 1
          %s250 = scalar_lea.sflag [#allocation7], %s249
          %s251 = sand.u32 %s113, 1
          %s252 = smul.addr %s251, 32
          %s253 = scalar_lea.vmem [#allocation8], %s252
          %255 = vsyncadd %s250, 0
          %s256 = smul.addr %s24, 2
          %s257 = smul.addr %s256, 8
          %s258 = scalar_lea.hbm %s3, %s257
          %s259 = sshll.u32 %s258, 4
          %s260 = int_to_ptr.hbm [resolvable:$true] %s259
          %s261 = sshll.u32 %s253, 4
          %s262 = int_to_ptr.vmem [resolvable:$true] %s261
          %267 = dma.hbm_to_vmem [thread:$0]  %s260, 512, %s262, %s250, 512, 256, 16
        $region32: #{dual_weighted_update.1} parent=19 // pred_fallthru
          _
        // Predicated region
        $region33: #{dual_weighted_update.1} parent=19 // pred_check
          %p268 = pneg %p149
        $region34: #{dual_weighted_update.1} parent=19 // pred_check_branch
          %270 = sbr.rel (%p268) target = $region36
        $region35: #{dual_weighted_update.1} parent=19 // pred_region
          %s271 = sand.u32 %s139, 1
          %s272 = scalar_lea.sflag [#allocation10], %s271
          %s273 = sand.u32 %s139, 1
          %s274 = smul.addr %s273, 32
          %s275 = scalar_lea.vmem [#allocation9], %s274
          %277 = vsyncadd %s272, 0
          %s278 = smul.addr %s24, 2
          %s279 = smul.addr %s278, 8
          %s280 = scalar_lea.hbm %s4, %s279
          %s281 = sshll.u32 %s280, 4
          %s282 = int_to_ptr.hbm [resolvable:$true] %s281
          %s283 = sshll.u32 %s275, 4
          %s284 = int_to_ptr.vmem [resolvable:$true] %s283
          %289 = dma.hbm_to_vmem [thread:$0]  %s282, 512, %s284, %s272, 512, 256, 16
        $region36: #{dual_weighted_update.1} parent=19 // pred_fallthru
          _
      $region20: #{dual_weighted_update.1} parent=5 // pred_fallthru
        _
      %p290 = scmp.le.s32.totalorder 1, %s24
      %p291 = scmp.lt.s32.totalorder %s24, 3
      %p292 = pnand %p290, %p291
      %p293 = pneg %p292
      // Predicated region
      $region37: #{dual_weighted_update.1} parent=5 // pred_check
        _
      $region38: #{dual_weighted_update.1} parent=5 // pred_check_branch
        %295 = sbr.rel (%p292) target = $region40
      $region39: #{dual_weighted_update.1} parent=5 // pred_region
        %s296 = ssub.s32 %s24, 1
        %s297 = sand.u32 %s58, 1
        %s298 = scalar_lea.sflag [#allocation4], %s297
        %s299 = sand.u32 %s58, 1
        %s300 = smul.addr %s299, 16
        %s301 = scalar_lea.vmem [#allocation3], %s300
        // Predicated region
        $region41: #{dual_weighted_update.1} parent=39 // pred_check
          %p302 = pneg %p71
        $region42: #{dual_weighted_update.1} parent=39 // pred_check_branch
          %304 = sbr.rel (%p302) target = $region44
        $region43: #{dual_weighted_update.1} parent=39 // pred_region
          %306 = dma.done %s298, 256
        $region44: #{dual_weighted_update.1} parent=39 // pred_fallthru
          _
        %s307 = sand.u32 %s29, 1
        %s308 = scalar_lea.sflag [#allocation7], %s307
        %s309 = sand.u32 %s90, 1
        %s310 = smul.addr %s309, 16
        %s311 = scalar_lea.vmem [#allocation6], %s310
        // Predicated region
        $region45: #{dual_weighted_update.1} parent=39 // pred_check
          %p312 = pneg %p103
        $region46: #{dual_weighted_update.1} parent=39 // pred_check_branch
          %314 = sbr.rel (%p312) target = $region48
        $region47: #{dual_weighted_update.1} parent=39 // pred_region
          %316 = dma.done %s308, 256
        $region48: #{dual_weighted_update.1} parent=39 // pred_fallthru
          _
        %s317 = sand.u32 %s29, 1
        %s318 = scalar_lea.sflag [#allocation7], %s317
        %s319 = sand.u32 %s116, 1
        %s320 = smul.addr %s319, 32
        %s321 = scalar_lea.vmem [#allocation8], %s320
        // Predicated region
        $region49: #{dual_weighted_update.1} parent=39 // pred_check
          %p322 = pneg %p129
        $region50: #{dual_weighted_update.1} parent=39 // pred_check_branch
          %324 = sbr.rel (%p322) target = $region52
        $region51: #{dual_weighted_update.1} parent=39 // pred_region
          %326 = dma.done %s318, 512
        $region52: #{dual_weighted_update.1} parent=39 // pred_fallthru
          _
        %s327 = sand.u32 %s142, 1
        %s328 = scalar_lea.sflag [#allocation10], %s327
        %s329 = sand.u32 %s142, 1
        %s330 = smul.addr %s329, 32
        %s331 = scalar_lea.vmem [#allocation9], %s330
        // Predicated region
        $region53: #{dual_weighted_update.1} parent=39 // pred_check
          %p332 = pneg %p155
        $region54: #{dual_weighted_update.1} parent=39 // pred_check_branch
          %334 = sbr.rel (%p332) target = $region56
        $region55: #{dual_weighted_update.1} parent=39 // pred_region
          %336 = dma.done %s328, 512
        $region56: #{dual_weighted_update.1} parent=39 // pred_fallthru
          _
        %p337 = pneg %p45
        %p338 = pneg %p42
        %s339 = sand.u32 %s58, 1
        %s340 = scalar_lea.sflag [#allocation4], %s339
        %s341 = sand.u32 %s58, 1
        %s342 = smul.addr %s341, 16
        %s343 = scalar_lea.vmem [#allocation3], %s342
        %p344 = pneg %p71
        %p345 = pneg %p68
        %s346 = sand.u32 %s29, 1
        %s347 = scalar_lea.sflag [#allocation7], %s346
        %s348 = sand.u32 %s90, 1
        %s349 = smul.addr %s348, 16
        %s350 = scalar_lea.vmem [#allocation6], %s349
        %p351 = pneg %p103
        %p352 = pneg %p100
        %s353 = sand.u32 %s29, 1
        %s354 = scalar_lea.sflag [#allocation7], %s353
        %s355 = sand.u32 %s116, 1
        %s356 = smul.addr %s355, 32
        %s357 = scalar_lea.vmem [#allocation8], %s356
        %p358 = pneg %p129
        %p359 = pneg %p126
        %s360 = sand.u32 %s142, 1
        %s361 = scalar_lea.sflag [#allocation10], %s360
        %s362 = sand.u32 %s142, 1
        %s363 = smul.addr %s362, 32
        %s364 = scalar_lea.vmem [#allocation9], %s363
        %p365 = pneg %p155
        %p366 = pneg %p152
        %p367 = pneg %p181
        %p368 = pneg %p178
        %s369 = sand.u32 %s168, 1
        %s370 = scalar_lea.sflag [#allocation5], %s369
        %s371 = sand.u32 %s168, 1
        %s372 = smul.addr %s371, 32
        %s373 = scalar_lea.vmem [#allocation11], %s372
        %s374 = sadd.s32 %s29, 1
        %p375 = scmp.lt.s32.totalorder %s374, 1
        %s376 = scalar_select %p375, %s374, 1
        %s377 = sld [smem:[#allocation2]]
        %v378 = vld [vmem:[%s301] sm:$0xff]
        %v379 = vld [vmem:[%s301 + $0x8] sm:$0xff]
        %382 = vrot.lane.b32.xlu0 %v378, 127
        %v383 = vpop.permute.xlu0 %382
        %384 = vrot.lane.b32.xlu0 %v379, 127
        %v385 = vpop.permute.xlu0 %384
        %vm386 = vcmask 1039360
        %v387 = vsel %vm386, %v383, %v385
        %v390 = vsel %vm386, %v385, %v379
        %v391 = vld [vmem:[%s321] sm:$0xff]
        %v392 = vld [vmem:[%s321 + $0x8] sm:$0xff]
        %v393 = vld [vmem:[%s331] sm:$0xff]
        %v394 = vld [vmem:[%s331 + $0x8] sm:$0xff]
        %v395 = vsub.f32 %v387, %v378
        %v396 = vsub.f32 %v390, %v379
        %v397 = vmul.f32 %v393, %v395
        %v398 = vmul.f32 %v394, %v396
        %v399 = vstv %s377
        %v400 = vmul.f32 %v399, %v397
        %v401 = vmul.f32 %v399, %v398
        %v402 = vadd.f32 %v391, %v400
        %v403 = vadd.f32 %v392, %v401
        %404 = vst [vmem:[%s373] sm:$0xff] %v402
        %405 = vst [vmem:[%s373 + $0x8] sm:$0xff] %v403
        %v406 = vld [vmem:[%s311] ss:$8 sm:$0x3]
        %v407 = vrot.slane %v378, 1
        %v408 = vrot.slane %v379, 1
        %v412 = vperm.slane %v406, 0
        %v413 = vperm.slane %v406, 1
        %vm416 = vcmask 1046528
        %v417 = vsel %vm416, %v407, %v412
        %v418 = vsel %vm416, %v408, %v413
        %v419 = vsub.f32 %v417, %v378
        %v420 = vsub.f32 %v418, %v379
        %s421 = scalar_lea.vmem %s321, 16 [#allocation8]
        %v422 = vld [vmem:[%s421] sm:$0xff]
        %v423 = vld [vmem:[%s421 + $0x8] sm:$0xff]
        %s424 = scalar_lea.vmem %s331, 16 [#allocation9]
        %v425 = vld [vmem:[%s424] sm:$0xff]
        %v426 = vld [vmem:[%s424 + $0x8] sm:$0xff]
        %v427 = vmul.f32 %v425, %v419
        %v428 = vmul.f32 %v426, %v420
        %v429 = vmul.f32 %v399, %v427
        %v430 = vmul.f32 %v399, %v428
        %v431 = vadd.f32 %v422, %v429
        %v432 = vadd.f32 %v423, %v430
        %s433 = scalar_lea.vmem %s373, 16 [#allocation11]
        %434 = vst [vmem:[%s433] sm:$0xff] %v431
        %435 = vst [vmem:[%s433 + $0x8] sm:$0xff] %v432
        %p436 = scmp.eq.s32.totalorder %s29, 1
        // Predicated region
        $region57: #{dual_weighted_update.1} parent=39 // pred_check
          %p437 = pneg %p436
        $region58: #{dual_weighted_update.1} parent=39 // pred_check_branch
          %439 = sbr.rel (%p437) target = $region60
        $region59: #{dual_weighted_update.1} parent=39 // pred_region
          %v440 = vlaneseq
          %v441 = vshrl.u32 %v440, 7
          %vm442 = vcmp.eq.s32.totalorder %v441, 7
          %v443 = vsel %vm442, 0.0, %v419
          %v444 = vsel %vm442, 0.0, %v420
          %v445 = vld [vmem:[%s421] sm:$0xff]
          %v446 = vld [vmem:[%s421 + $0x8] sm:$0xff]
          %v447 = vld [vmem:[%s424] sm:$0xff]
          %v448 = vld [vmem:[%s424 + $0x8] sm:$0xff]
          %v449 = vmul.f32 %v447, %v443
          %v450 = vmul.f32 %v448, %v444
          %v451 = vmul.f32 %v399, %v449
          %v452 = vmul.f32 %v399, %v450
          %v453 = vadd.f32 %v445, %v451
          %v454 = vadd.f32 %v446, %v452
          %455 = vst [vmem:[%s433] sm:$0xff] %v453
          %456 = vst [vmem:[%s433 + $0x8] sm:$0xff] %v454
        $region60: #{dual_weighted_update.1} parent=39 // pred_fallthru
          _
        %s457 = sand.u32 %s168, 1
        %s458 = scalar_lea.sflag [#allocation5], %s457
        %s459 = sand.u32 %s168, 1
        %s460 = smul.addr %s459, 32
        %s461 = scalar_lea.vmem [#allocation11], %s460
        // Predicated region
        $region61: #{dual_weighted_update.1} parent=39 // pred_check
          %p462 = pneg %p178
        $region62: #{dual_weighted_update.1} parent=39 // pred_check_branch
          %464 = sbr.rel (%p462) target = $region64
        $region63: #{dual_weighted_update.1} parent=39 // pred_region
          %466 = vsyncadd %s458, 0
          %s467 = smul.addr %s29, 2
          %s468 = smul.addr %s467, 8
          %s469 = scalar_lea.hbm %s5, %s468
          %s470 = sshll.u32 %s461, 4
          %s471 = int_to_ptr.vmem [resolvable:$true] %s470
          %s472 = sshll.u32 %s469, 4
          %s473 = int_to_ptr.hbm [resolvable:$true] %s472
          %478 = dma.vmem_to_hbm [thread:$0]  %s471, 512, %s473, %s458, 256, 512, 16
        $region64: #{dual_weighted_update.1} parent=39 // pred_fallthru
          _
      $region40: #{dual_weighted_update.1} parent=5 // pred_fallthru
        _
      %p479 = scmp.le.s32.totalorder 2, %s24
      // Predicated region
      $region65: #{dual_weighted_update.1} parent=5 // pred_check
        %p480 = pneg %p479
      $region66: #{dual_weighted_update.1} parent=5 // pred_check_branch
        %482 = sbr.rel (%p480) target = $region68
      $region67: #{dual_weighted_update.1} parent=5 // pred_region
        %s483 = ssub.s32 %s24, 2
        // Predicated region
        $region69: #{dual_weighted_update.1} parent=67 // pred_check
          %p484 = pneg %p184
        $region70: #{dual_weighted_update.1} parent=67 // pred_check_branch
          %486 = sbr.rel (%p484) target = $region72
        $region71: #{dual_weighted_update.1} parent=67 // pred_region
          %s487 = sand.u32 %s169, 1
          %s488 = scalar_lea.sflag [#allocation5], %s487
          %s489 = sand.u32 %s169, 1
          %s490 = smul.addr %s489, 32
          %s491 = scalar_lea.vmem [#allocation11], %s490
          %493 = dma.done %s488, 512
        $region72: #{dual_weighted_update.1} parent=67 // pred_fallthru
          _
      $region68: #{dual_weighted_update.1} parent=5 // pred_fallthru
        _
    $region6: #{dual_weighted_update.1} parent=1 // loop_footer
      %s28 = sadd.s32 1, %s24
    $region7: #{dual_weighted_update.1} parent=1 // loop_footer_branch
      %23 = sbr.rel target = $region3
    $region8: #{dual_weighted_update.1} parent=1 // loop_exit
      _
    %494 = vsyncpa [#allocation4], 1
    %s495 = scalar_lea.sflag [#allocation4], 1
    %496 = vsyncpa %s495, 1
    %497 = vsyncpa [#allocation7], 1
    %s498 = scalar_lea.sflag [#allocation7], 1
    %499 = vsyncpa %s498, 1
    %500 = vsyncpa [#allocation10], 1
    %s501 = scalar_lea.sflag [#allocation10], 1
    %502 = vsyncpa %s501, 1
    %503 = vsyncpa [#allocation5], 1
    %s504 = scalar_lea.sflag [#allocation5], 1
    %505 = vsyncpa %s504, 1

</llo_original>
